<compile_context>
chip_gen: v6e
topology: v6e:2x2x1
jax: 0.10.0
libtpu: 0.0.40
codegen_flags: <defaults>
</compile_context>

<pallas_src>
import numpy as np
import jax
import jax.numpy as jnp
from jax import lax
from jax.experimental import pallas as pl
from jax.experimental.pallas import tpu as pltpu

SIGMA = 2.0
_NEG_BIG = -1.0e9                 # pred pad value: sigmoid(-1e9) == 0 exactly (f32/bf16)
_FAR_CENTER = 1.0e6               # "no keypoint" center: gaussian underflows to exactly 0
_VMEM_BUDGET_BYTES = 12 * 1024 * 1024      # pred + param blocks, both pipeline buffers
_SPLIT_THRESHOLD_BYTES = 4 * 1024 * 1024   # force >= 2 grid blocks above this (megacore)


def _wrap_mse_kernel(params_ref, pred_ref, out_ref):
    # params: f32[CB, 2, 1]  (sublane 0 = x0, sublane 1 = y0)
    # pred:   [CB, H, W]
    # out:    f32[1, 1, 1]   (per-block partial sum of squared diffs)
    p = pred_ref[...].astype(jnp.float32)                     # (CB, H, W), f32 math
    _, h, w = p.shape

    prm = params_ref[...]                                     # (CB, 2, 1)
    x0 = prm[:, 0:1, :]                                       # (CB, 1, 1)
    y0 = prm[:, 1:2, :]                                       # (CB, 1, 1)

    inv2s2 = jnp.float32(1.0 / (2.0 * SIGMA * SIGMA))
    xx = lax.broadcasted_iota(jnp.int32, (1, 1, w), 2).astype(jnp.float32)  # lane axis = x
    yy = lax.broadcasted_iota(jnp.int32, (1, h, 1), 1).astype(jnp.float32)  # sublane = y

    # Separable gaussian: H + W exps per channel instead of H*W.
    # Channels with no keypoint have x0 = 1e6 -> gx == 0 everywhere -> target == 0.
    gx = jnp.exp(-((xx - x0) ** 2) * inv2s2)                  # (CB, 1, W)
    gy = jnp.exp(-((yy - y0) ** 2) * inv2s2)                  # (CB, H, 1)

    # Sigmoid via tanh: single EUP transcendental per element.
    s = 0.5 * jnp.tanh(0.5 * p) + 0.5

    d = s - gy * gx                                           # broadcast VPU multiply
    dd = d * d

    # Channel-first reduction: VPU adds across the block-channel axis, then a single
    # lane reduce and sublane reduce on the (H, W) slab.
    acc = jnp.sum(dd, axis=0, keepdims=True)                  # (1, H, W)  VPU adds
    acc = jnp.sum(acc, axis=2, keepdims=True)                 # (1, H, 1)  lane reduce
    out_ref[...] = jnp.sum(acc, axis=1, keepdims=True)        # (1, 1, 1)  sublane reduce


def _choose_channel_block(n, h, w, itemsize):
    """Channels per block, budgeting the padded VMEM footprint (x2 buffers)."""
    h_pad = -(-h // 8) * 8
    w_pad = -(-w // 128) * 128
    pred_bytes = h_pad * w_pad * itemsize                  # pred tile per channel
    param_bytes = 8 * 128 * 4                              # (2,1) pads to an (8,128) f32 tile
    per_chan = 2 * (pred_bytes + param_bytes)              # x2 double-buffering
    cb = max(1, _VMEM_BUDGET_BYTES // per_chan)
    cb = int(min(n, cb))
    # Keep >= 2 blocks when the problem is big enough to amortize ~0.35us/step, so the
    # "parallel" grid axis can use both v7x TensorCores.
    if n >= 2 and n * pred_bytes >= _SPLIT_THRESHOLD_BYTES:
        cb = min(cb, -(-n // 2))
    return int(max(1, cb))


def _pallas_wrap_mse(pred_flat, cx, cy, valid):
    """pred_flat: (N, H, W); cx/cy/valid: (N,). Returns scalar f32 loss."""
    n, h, w = pred_flat.shape
    cb = _choose_channel_block(n, h, w, jnp.dtype(pred_flat.dtype).itemsize)
    n_blocks = pl.cdiv(n, cb)
    n_pad = n_blocks * cb

    # Fold `valid` into cx: invalid channels get a far-away center -> target exactly 0.
    cx_eff = jnp.where(valid.astype(jnp.float32) > 0.5,
                       cx.astype(jnp.float32), jnp.float32(_FAR_CENTER))
    cy_eff = cy.astype(jnp.float32)

    if n_pad != n:
        pad = n_pad - n
        # Padded channels: sigmoid(-1e9) == 0 and target == 0 -> zero contribution.
        pred_flat = jnp.pad(pred_flat, ((0, pad), (0, 0), (0, 0)),
                            constant_values=_NEG_BIG)
        cx_eff = jnp.pad(cx_eff, (0, pad), constant_values=_FAR_CENTER)
        cy_eff = jnp.pad(cy_eff, (0, pad))

    params = jnp.stack([cx_eff, cy_eff], axis=1).reshape(n_pad, 2, 1)

    partials = pl.pallas_call(
        _wrap_mse_kernel,
        out_shape=jax.ShapeDtypeStruct((n_blocks, 1, 1), jnp.float32),
        grid=(n_blocks,),
        in_specs=[
            pl.BlockSpec((cb, 2, 1), lambda i: (i, 0, 0)),    # packed (cx, cy)
            pl.BlockSpec((cb, h, w), lambda i: (i, 0, 0)),    # pred slab
        ],
        out_specs=pl.BlockSpec((1, 1, 1), lambda i: (i, 0, 0)),
        compiler_params=pltpu.CompilerParams(
            dimension_semantics=("parallel",),                # independent per-block partials
            vmem_limit_bytes=32 * 1024 * 1024,
        ),
    )(params, pred_flat)

    return jnp.sum(partials) / jnp.float32(n * h * w)


def build_keypoint_params(keypoints_batch, class_labels_batch, bs, classes):
    """Host-side glue: resolve the Python keypoint / class-label lists into dense
    per-(batch, class) gaussian params. Later keypoints of the same class overwrite
    earlier ones, matching the PyTorch assignment loop."""
    cx = np.zeros((bs * classes,), np.float32)
    cy = np.zeros((bs * classes,), np.float32)
    valid = np.zeros((bs * classes,), np.float32)
    for b in range(bs):
        assert len(keypoints_batch[b]) == len(class_labels_batch[b])
        for j in range(len(keypoints_batch[b])):
            cls = int(class_labels_batch[b][j])
            idx = b * classes + cls
            cx[idx] = float(keypoints_batch[b][j][0])
            cy[idx] = float(keypoints_batch[b][j][1])
            valid[idx] = 1.0
    return cx, cy, valid


@jax.jit
def wrap_mse_loss_from_params(pred, cx, cy, valid):
    """Device-side path (jittable): pred (bs, classes, H, W) + dense params."""
    bs, c, h, w = pred.shape
    pred_flat = pred.reshape(bs * c, h, w)   # pred may be bf16 or f32; cast happens in-kernel
    return _pallas_wrap_mse(pred_flat, cx, cy, valid)


def wrap_mse_loss(pred, keypoints_batch, class_labels_batch, classes, size):
    """JAX/Pallas equivalent of WrapMSELoss.forward.

    pred: (bs, classes, H, W).  size = (W, H) as in the PyTorch module
    (size[0] is the gaussian x/width axis, size[1] the y/height axis).
    """
    bs, c, h, w = pred.shape
    assert bs == len(keypoints_batch) and bs == len(class_labels_batch)
    assert c == classes
    assert size == (w, h), "size must match pred spatial dims (W, H)"
    # TODO(synk): the Python keypoint/class-label list parsing has no device-side
    # equivalent; it is resolved on the host into dense per-channel params.
    cx, cy, valid = build_keypoint_params(keypoints_batch, class_labels_batch, bs, classes)
    return wrap_mse_loss_from_params(pred, jnp.asarray(cx), jnp.asarray(cy),
                                     jnp.asarray(valid))


def _reference_loss(pred_flat, cx, cy, valid):
    """Pure-JAX reference for correctness checking."""
    s = jax.nn.sigmoid(pred_flat.astype(jnp.float32))
    n, h, w = pred_flat.shape
    yy = jnp.arange(h, dtype=jnp.float32)[None, :, None]
    xx = jnp.arange(w, dtype=jnp.float32)[None, None, :]
    g = jnp.exp(-((xx - cx[:, None, None]) ** 2 + (yy - cy[:, None, None]) ** 2)
                / (2.0 * SIGMA * SIGMA))
    target = jnp.where(valid[:, None, None] > 0.5, g, 0.0)
    return jnp.mean((s - target) ** 2)


if __name__ == "__main__":
    # Small shapes consistent with the module: batch=2, classes=4, H=16, W=128.
    bs, classes, H, W = 2, 4, 16, 128
    size = (W, H)   # module convention: size = (width, height)

    key = jax.random.PRNGKey(0)
    pred = jax.random.normal(key, (bs, classes, H, W), dtype=jnp.float32)

    keypoints_batch = [
        [(30.0, 5.0), (100.5, 10.25)],   # batch 0: two keypoints
        [(64.0, 8.0)],                   # batch 1: one keypoint
    ]
    class_labels_batch = [
        [0, 2],
        [3],
    ]

    loss = wrap_mse_loss(pred, keypoints_batch, class_labels_batch, classes, size)
    loss = jax.block_until_ready(loss)

    # Silent correctness check against a pure-JAX reference.
    cx, cy, valid = build_keypoint_params(keypoints_batch, class_labels_batch, bs, classes)
    ref = _reference_loss(pred.reshape(bs * classes, H, W),
                          jnp.asarray(cx), jnp.asarray(cy), jnp.asarray(valid))
    np.testing.assert_allclose(np.asarray(loss), np.asarray(ref), rtol=1e-4, atol=1e-6)

    print("KERNEL_OK")
</pallas_src>

<mosaic_0001>
module attributes {stable_mosaic.version = 11 : i64} {
  func.func @_wrap_mse_kernel(%arg0: i32, %arg1: memref<8x2x1xf32, #tpu.memory_space<vmem>>, %arg2: memref<8x16x128xf32, #tpu.memory_space<vmem>>, %arg3: memref<1x1x1xf32, #tpu.memory_space<vmem>>) attributes {dimension_semantics = [#tpu.dimension_semantics<parallel>], iteration_bounds = array<i64: 1>, scalar_prefetch = 0 : i64, scratch_operands = 0 : i64, tpu.core_type = #tpu.core_type<tc>, window_params = [{transform_indices = @transform_0, window_bounds = array<i64: 8, 2, 1>}, {transform_indices = @transform_1, window_bounds = array<i64: 8, 16, 128>}, {transform_indices = @transform_2, window_bounds = array<i64: 1, 1, 1>}]} {
    %c0 = arith.constant 0 : index
    %c0_0 = arith.constant 0 : index
    %c0_1 = arith.constant 0 : index
    %0 = vector.load %arg2[%c0, %c0_0, %c0_1] : memref<8x16x128xf32, #tpu.memory_space<vmem>>, vector<8x16x128xf32>
    %c0_2 = arith.constant 0 : index
    %c0_3 = arith.constant 0 : index
    %c0_4 = arith.constant 0 : index
    %1 = vector.load %arg1[%c0_2, %c0_3, %c0_4] : memref<8x2x1xf32, #tpu.memory_space<vmem>>, vector<8x2x1xf32>
    %2 = vector.extract_strided_slice %1 {offsets = [0, 0, 0], sizes = [8, 1, 1], strides = [1, 1, 1]} : vector<8x2x1xf32> to vector<8x1x1xf32>
    %3 = vector.extract_strided_slice %1 {offsets = [0, 1, 0], sizes = [8, 1, 1], strides = [1, 1, 1]} : vector<8x2x1xf32> to vector<8x1x1xf32>
    %4 = tpu.iota {dimensions = array<i32: 2>} : vector<1x1x128xi32>
    %5 = arith.sitofp %4 : vector<1x1x128xi32> to vector<1x1x128xf32>
    %6 = tpu.iota {dimensions = array<i32: 1>} : vector<1x16x1xi32>
    %7 = arith.sitofp %6 : vector<1x16x1xi32> to vector<1x16x1xf32>
    %8 = vector.broadcast %5 : vector<1x1x128xf32> to vector<8x1x128xf32>
    %9 = vector.broadcast %2 : vector<8x1x1xf32> to vector<8x1x128xf32>
    %10 = arith.subf %8, %9 : vector<8x1x128xf32>
    %11 = arith.mulf %10, %10 : vector<8x1x128xf32>
    %cst = arith.constant 0.000000e+00 : f32
    %12 = vector.broadcast %cst : f32 to vector<8x1x128xf32>
    %13 = arith.subf %12, %11 : vector<8x1x128xf32>
    %cst_5 = arith.constant 1.250000e-01 : f32
    %14 = vector.broadcast %cst_5 : f32 to vector<8x1x128xf32>
    %15 = arith.mulf %13, %14 : vector<8x1x128xf32>
    %16 = math.exp %15 : vector<8x1x128xf32>
    %17 = vector.broadcast %7 : vector<1x16x1xf32> to vector<8x16x1xf32>
    %18 = vector.broadcast %3 : vector<8x1x1xf32> to vector<8x16x1xf32>
    %19 = arith.subf %17, %18 : vector<8x16x1xf32>
    %20 = arith.mulf %19, %19 : vector<8x16x1xf32>
    %cst_6 = arith.constant 0.000000e+00 : f32
    %21 = vector.broadcast %cst_6 : f32 to vector<8x16x1xf32>
    %22 = arith.subf %21, %20 : vector<8x16x1xf32>
    %cst_7 = arith.constant 1.250000e-01 : f32
    %23 = vector.broadcast %cst_7 : f32 to vector<8x16x1xf32>
    %24 = arith.mulf %22, %23 : vector<8x16x1xf32>
    %25 = math.exp %24 : vector<8x16x1xf32>
    %cst_8 = arith.constant 5.000000e-01 : f32
    %26 = vector.broadcast %cst_8 : f32 to vector<8x16x128xf32>
    %27 = arith.mulf %26, %0 : vector<8x16x128xf32>
    %28 = math.tanh %27 : vector<8x16x128xf32>
    %cst_9 = arith.constant 5.000000e-01 : f32
    %29 = vector.broadcast %cst_9 : f32 to vector<8x16x128xf32>
    %30 = arith.mulf %29, %28 : vector<8x16x128xf32>
    %cst_10 = arith.constant 5.000000e-01 : f32
    %31 = vector.broadcast %cst_10 : f32 to vector<8x16x128xf32>
    %32 = arith.addf %30, %31 : vector<8x16x128xf32>
    %33 = vector.broadcast %25 : vector<8x16x1xf32> to vector<8x16x128xf32>
    %34 = vector.broadcast %16 : vector<8x1x128xf32> to vector<8x16x128xf32>
    %35 = arith.mulf %33, %34 : vector<8x16x128xf32>
    %36 = arith.subf %32, %35 : vector<8x16x128xf32>
    %37 = arith.mulf %36, %36 : vector<8x16x128xf32>
    %cst_11 = arith.constant dense<0.000000e+00> : vector<16x128xf32>
    %38 = vector.multi_reduction <add>, %37, %cst_11 [0] : vector<8x16x128xf32> to vector<16x128xf32>
    %39 = vector.shape_cast %38 : vector<16x128xf32> to vector<1x16x128xf32>
    %cst_12 = arith.constant dense<0.000000e+00> : vector<1x16xf32>
    %40 = vector.multi_reduction <add>, %39, %cst_12 [2] : vector<1x16x128xf32> to vector<1x16xf32>
    %41 = vector.shape_cast %40 : vector<1x16xf32> to vector<1x16x1xf32>
    %cst_13 = arith.constant dense<0.000000e+00> : vector<1x1xf32>
    %42 = vector.multi_reduction <add>, %41, %cst_13 [1] : vector<1x16x1xf32> to vector<1x1xf32>
    %43 = vector.shape_cast %42 : vector<1x1xf32> to vector<1x1x1xf32>
    %c0_14 = arith.constant 0 : index
    %c0_15 = arith.constant 0 : index
    %c0_16 = arith.constant 0 : index
    %44 = vector.load %arg3[%c0_14, %c0_15, %c0_16] : memref<1x1x1xf32, #tpu.memory_space<vmem>>, vector<1x1x1xf32>
    tpu.vector_store %arg3[%c0_14, %c0_15, %c0_16], %43 {strides = array<i32>} : memref<1x1x1xf32, #tpu.memory_space<vmem>>, vector<1x1x1xf32>,
    return
  }
  func.func @transform_0(%arg0: i32) -> (i32, i32, i32) {
    %c0_i32 = arith.constant 0 : i32
    %c0_i32_0 = arith.constant 0 : i32
    %c0_i32_1 = arith.constant 0 : i32
    return %arg0, %c0_i32, %c0_i32_0 : i32, i32, i32
  }
  func.func @transform_1(%arg0: i32) -> (i32, i32, i32) {
    %c0_i32 = arith.constant 0 : i32
    %c0_i32_0 = arith.constant 0 : i32
    %c0_i32_1 = arith.constant 0 : i32
    return %arg0, %c0_i32, %c0_i32_0 : i32, i32, i32
  }
  func.func @transform_2(%arg0: i32) -> (i32, i32, i32) {
    %c0_i32 = arith.constant 0 : i32
    %c0_i32_0 = arith.constant 0 : i32
    %c0_i32_1 = arith.constant 0 : i32
    return %arg0, %c0_i32, %c0_i32_0 : i32, i32, i32
  }
}

</mosaic_0001>

<llo_original>
// kernel: wrap_mse_loss_from_params.1
$region0: #{wrap_mse_loss_from_params.1}
  #allocation0 [shape = 'u32[]', space=smem, size = 0x4, offset = 0x4, fixed_abs, tag = 'smem constant byte address 0x4 - core index']
  #allocation1 [shape = 'u32[144,128]{1,0:T(1,128)}', space=vmem, size = 0x12000, scoped, tag = 'internal scratch']
  %s0 = inlined_call_operand.vmem [shape: f32[8,2,1], index: 0, kind: input, shape index: {}]
  %s1 = inlined_call_operand.hbm [shape: f32[8,16,128], index: 1, kind: input, shape index: {}]
  %s2 = inlined_call_operand.hbm [shape: f32[1,1,1], index: 2, kind: output, shape index: {}]
  %s3 = sld [smem:[#allocation0]]
  $region22: #{wrap_mse_loss_from_params.1} parent=0
    _
  %s5 = ssub.s32 1, %s3
  %s6 = scalar_select 0, %s5, %s3
  $region1: #{wrap_mse_loss_from_params.1} parent=0
    #allocation2 [shape = 'u8[65536]{0}', space=vmem, size = 0x10000, scoped, tag = 'input window, operand 1, single buffered']
    #allocation3 [shape = 's32[1]{0}', space=sflag, size = 0x4, scoped, tag = 'scoped memory for wrap_mse_loss_from_params.1']
    #allocation4 [shape = 's32[1]{0}', space=sflag, size = 0x4, scoped, tag = 'scoped memory for wrap_mse_loss_from_params.1']
    #allocation5 [shape = 'u8[512]{0}', space=vmem, size = 0x400, scoped, tag = 'output window, operand 0, single buffered']
    %7 = vsyncpa [#allocation3], 0
    %8 = vsyncpa [#allocation4], 0
    // Predicated region
    $region2: #{wrap_mse_loss_from_params.1} parent=1 // pred_check
      _
    $region3: #{wrap_mse_loss_from_params.1} parent=1 // pred_check_branch
      %10 = sbr.rel (0) target = $region5
    $region4: #{wrap_mse_loss_from_params.1} parent=1 // pred_region
      _
    $region5: #{wrap_mse_loss_from_params.1} parent=1 // pred_fallthru
      _
    // Predicated region
    $region6: #{wrap_mse_loss_from_params.1} parent=1 // pred_check
      _
    $region7: #{wrap_mse_loss_from_params.1} parent=1 // pred_check_branch
      %12 = sbr.rel (0) target = $region9
    $region8: #{wrap_mse_loss_from_params.1} parent=1 // pred_region
      %s14 = ssub.s32 2048, 2048
      %15 = vsyncadd [#allocation3], %s14
      %s16 = sshll.u32 [#allocation2], 4
      %s17 = int_to_ptr.vmem [resolvable:$true] %s16
      %22 = dma.hbm_to_vmem [thread:$0]  %s1, 2048, %s17, [#allocation3], 128, 128, 8
    $region9: #{wrap_mse_loss_from_params.1} parent=1 // pred_fallthru
      _
    // Predicated region
    $region10: #{wrap_mse_loss_from_params.1} parent=1 // pred_check
      _
    $region11: #{wrap_mse_loss_from_params.1} parent=1 // pred_check_branch
      %24 = sbr.rel (0) target = $region13
    $region12: #{wrap_mse_loss_from_params.1} parent=1 // pred_region
      %25 = dma.done [#allocation3], 2048
    $region13: #{wrap_mse_loss_from_params.1} parent=1 // pred_fallthru
      _
    %v26 = vld [vmem:[#allocation2] sm:$0xff]
    %v27 = vld [vmem:[#allocation2 + $0x8] sm:$0xff]
    %v28 = vld [vmem:[#allocation2 + $0x10] sm:$0xff]
    %v29 = vld [vmem:[#allocation2 + $0x18] sm:$0xff]
    %v30 = vld [vmem:[#allocation2 + $0x20] sm:$0xff]
    %v31 = vld [vmem:[#allocation2 + $0x28] sm:$0xff]
    %v32 = vld [vmem:[#allocation2 + $0x30] sm:$0xff]
    %v33 = vld [vmem:[#allocation2 + $0x38] sm:$0xff]
    %v34 = vld [vmem:[#allocation2 + $0x40] sm:$0xff]
    %v35 = vld [vmem:[#allocation2 + $0x48] sm:$0xff]
    %v36 = vld [vmem:[#allocation2 + $0x50] sm:$0xff]
    %v37 = vld [vmem:[#allocation2 + $0x58] sm:$0xff]
    %v38 = vld [vmem:[#allocation2 + $0x60] sm:$0xff]
    %v39 = vld [vmem:[#allocation2 + $0x68] sm:$0xff]
    %v40 = vld [vmem:[#allocation2 + $0x70] sm:$0xff]
    %v41 = vld [vmem:[#allocation2 + $0x78] sm:$0xff]
    %v42 = vld [vmem:[%s0] sm:$0x3]
    %v43 = vld [vmem:[%s0 + $0x2] sm:$0x3]
    %v44 = vld [vmem:[%s0 + $0x4] sm:$0x3]
    %v45 = vld [vmem:[%s0 + $0x6] sm:$0x3]
    %v46 = vld [vmem:[%s0 + $0x8] sm:$0x3]
    %v47 = vld [vmem:[%s0 + $0xa] sm:$0x3]
    %v48 = vld [vmem:[%s0 + $0xc] sm:$0x3]
    %v49 = vld [vmem:[%s0 + $0xe] sm:$0x3]
    %v50 = vlaneseq
    %v51 = vand.u32 %v50, 127
    %v52 = vcvt.s32.f32 %v51
    %v53 = vlaneseq
    %v54 = vshrl.u32 %v53, 7
    %v55 = vadd.s32 %v54, 8
    %v56 = vcvt.s32.f32 %v54
    %v57 = vcvt.s32.f32 %v55
    %59 = vset.pattern.permute.xlu0 0
    %60 = vperm.xlu0 %59, %v42
    %v61 = vpop.permute.xlu0 %60
    %64 = vset.pattern.permute.xlu0 0
    %65 = vperm.xlu0 %64, %v43
    %v66 = vpop.permute.xlu0 %65
    %69 = vset.pattern.permute.xlu0 0
    %70 = vperm.xlu0 %69, %v44
    %v71 = vpop.permute.xlu0 %70
    %74 = vset.pattern.permute.xlu0 0
    %75 = vperm.xlu0 %74, %v45
    %v76 = vpop.permute.xlu0 %75
    %79 = vset.pattern.permute.xlu0 0
    %80 = vperm.xlu0 %79, %v46
    %v81 = vpop.permute.xlu0 %80
    %84 = vset.pattern.permute.xlu0 0
    %85 = vperm.xlu0 %84, %v47
    %v86 = vpop.permute.xlu0 %85
    %89 = vset.pattern.permute.xlu0 0
    %90 = vperm.xlu0 %89, %v48
    %v91 = vpop.permute.xlu0 %90
    %94 = vset.pattern.permute.xlu0 0
    %95 = vperm.xlu0 %94, %v49
    %v96 = vpop.permute.xlu0 %95
    %v98 = vsub.f32 %v52, %v61
    %v99 = vsub.f32 %v52, %v66
    %v100 = vsub.f32 %v52, %v71
    %v101 = vsub.f32 %v52, %v76
    %v102 = vsub.f32 %v52, %v81
    %v103 = vsub.f32 %v52, %v86
    %v104 = vsub.f32 %v52, %v91
    %v105 = vsub.f32 %v52, %v96
    %v106 = vmul.f32 %v98, %v98
    %v107 = vmul.f32 %v99, %v99
    %v108 = vmul.f32 %v100, %v100
    %v109 = vmul.f32 %v101, %v101
    %v110 = vmul.f32 %v102, %v102
    %v111 = vmul.f32 %v103, %v103
    %v112 = vmul.f32 %v104, %v104
    %v113 = vmul.f32 %v105, %v105
    %v114 = vsub.f32 0.0, %v106
    %v115 = vsub.f32 0.0, %v107
    %v116 = vsub.f32 0.0, %v108
    %v117 = vsub.f32 0.0, %v109
    %v118 = vsub.f32 0.0, %v110
    %v119 = vsub.f32 0.0, %v111
    %v120 = vsub.f32 0.0, %v112
    %v121 = vsub.f32 0.0, %v113
    %v122 = vmul.f32 %v114, 0.125
    %v123 = vmul.f32 %v115, 0.125
    %v124 = vmul.f32 %v116, 0.125
    %v125 = vmul.f32 %v117, 0.125
    %v126 = vmul.f32 %v118, 0.125
    %v127 = vmul.f32 %v119, 0.125
    %v128 = vmul.f32 %v120, 0.125
    %v129 = vmul.f32 %v121, 0.125
    %v130 = vmul.f32 %v122, 1.442695
    %v131 = vpow.pop %v130
    %v132 = vmul.f32 %v123, 1.442695
    %v133 = vpow.pop %v132
    %v134 = vmul.f32 %v124, 1.442695
    %v135 = vpow.pop %v134
    %v136 = vmul.f32 %v125, 1.442695
    %v137 = vpow.pop %v136
    %v138 = vmul.f32 %v126, 1.442695
    %v139 = vpow.pop %v138
    %v140 = vmul.f32 %v127, 1.442695
    %v141 = vpow.pop %v140
    %v142 = vmul.f32 %v128, 1.442695
    %v143 = vpow.pop %v142
    %v144 = vmul.f32 %v129, 1.442695
    %v145 = vpow.pop %v144
    %v146 = vlaneseq
    %v147 = vshrl.u32 %v146, 7
    %v148 = vsub.s32 1, %v147
    %v149 = vrot.slane %v42, %v148
    %v150 = vlaneseq
    %v151 = vshrl.u32 %v150, 7
    %v152 = vsub.s32 1, %v151
    %v153 = vrot.slane %v43, %v152
    %v154 = vlaneseq
    %v155 = vshrl.u32 %v154, 7
    %v156 = vsub.s32 1, %v155
    %v157 = vrot.slane %v44, %v156
    %v158 = vlaneseq
    %v159 = vshrl.u32 %v158, 7
    %v160 = vsub.s32 1, %v159
    %v161 = vrot.slane %v45, %v160
    %v162 = vlaneseq
    %v163 = vshrl.u32 %v162, 7
    %v164 = vsub.s32 1, %v163
    %v165 = vrot.slane %v46, %v164
    %v166 = vlaneseq
    %v167 = vshrl.u32 %v166, 7
    %v168 = vsub.s32 1, %v167
    %v169 = vrot.slane %v47, %v168
    %v170 = vlaneseq
    %v171 = vshrl.u32 %v170, 7
    %v172 = vsub.s32 1, %v171
    %v173 = vrot.slane %v48, %v172
    %v174 = vlaneseq
    %v175 = vshrl.u32 %v174, 7
    %v176 = vsub.s32 1, %v175
    %v177 = vrot.slane %v49, %v176
    %v178 = vsub.f32 %v56, %v149
    %v179 = vsub.f32 %v57, %v149
    %v180 = vsub.f32 %v56, %v153
    %v181 = vsub.f32 %v57, %v153
    %v182 = vsub.f32 %v56, %v157
    %v183 = vsub.f32 %v57, %v157
    %v184 = vsub.f32 %v56, %v161
    %v185 = vsub.f32 %v57, %v161
    %v186 = vsub.f32 %v56, %v165
    %v187 = vsub.f32 %v57, %v165
    %v188 = vsub.f32 %v56, %v169
    %v189 = vsub.f32 %v57, %v169
    %v190 = vsub.f32 %v56, %v173
    %v191 = vsub.f32 %v57, %v173
    %v192 = vsub.f32 %v56, %v177
    %v193 = vsub.f32 %v57, %v177
    %v194 = vmul.f32 %v178, %v178
    %v195 = vmul.f32 %v179, %v179
    %v196 = vmul.f32 %v180, %v180
    %v197 = vmul.f32 %v181, %v181
    %v198 = vmul.f32 %v182, %v182
    %v199 = vmul.f32 %v183, %v183
    %v200 = vmul.f32 %v184, %v184
    %v201 = vmul.f32 %v185, %v185
    %v202 = vmul.f32 %v186, %v186
    %v203 = vmul.f32 %v187, %v187
    %v204 = vmul.f32 %v188, %v188
    %v205 = vmul.f32 %v189, %v189
    %v206 = vmul.f32 %v190, %v190
    %v207 = vmul.f32 %v191, %v191
    %v208 = vmul.f32 %v192, %v192
    %v209 = vmul.f32 %v193, %v193
    %v210 = vsub.f32 0.0, %v194
    %v211 = vsub.f32 0.0, %v195
    %v212 = vsub.f32 0.0, %v196
    %v213 = vsub.f32 0.0, %v197
    %v214 = vsub.f32 0.0, %v198
    %v215 = vsub.f32 0.0, %v199
    %v216 = vsub.f32 0.0, %v200
    %v217 = vsub.f32 0.0, %v201
    %v218 = vsub.f32 0.0, %v202
    %v219 = vsub.f32 0.0, %v203
    %v220 = vsub.f32 0.0, %v204
    %v221 = vsub.f32 0.0, %v205
    %v222 = vsub.f32 0.0, %v206
    %v223 = vsub.f32 0.0, %v207
    %v224 = vsub.f32 0.0, %v208
    %v225 = vsub.f32 0.0, %v209
    %v226 = vmul.f32 %v210, 0.125
    %v227 = vmul.f32 %v211, 0.125
    %v228 = vmul.f32 %v212, 0.125
    %v229 = vmul.f32 %v213, 0.125
    %v230 = vmul.f32 %v214, 0.125
    %v231 = vmul.f32 %v215, 0.125
    %v232 = vmul.f32 %v216, 0.125
    %v233 = vmul.f32 %v217, 0.125
    %v234 = vmul.f32 %v218, 0.125
    %v235 = vmul.f32 %v219, 0.125
    %v236 = vmul.f32 %v220, 0.125
    %v237 = vmul.f32 %v221, 0.125
    %v238 = vmul.f32 %v222, 0.125
    %v239 = vmul.f32 %v223, 0.125
    %v240 = vmul.f32 %v224, 0.125
    %v241 = vmul.f32 %v225, 0.125
    %v242 = vmul.f32 %v226, 1.442695
    %v243 = vpow.pop %v242
    %v244 = vmul.f32 %v227, 1.442695
    %v245 = vpow.pop %v244
    %v246 = vmul.f32 %v228, 1.442695
    %v247 = vpow.pop %v246
    %v248 = vmul.f32 %v229, 1.442695
    %v249 = vpow.pop %v248
    %v250 = vmul.f32 %v230, 1.442695
    %v251 = vpow.pop %v250
    %v252 = vmul.f32 %v231, 1.442695
    %v253 = vpow.pop %v252
    %v254 = vmul.f32 %v232, 1.442695
    %v255 = vpow.pop %v254
    %v256 = vmul.f32 %v233, 1.442695
    %v257 = vpow.pop %v256
    %v258 = vmul.f32 %v234, 1.442695
    %v259 = vpow.pop %v258
    %v260 = vmul.f32 %v235, 1.442695
    %v261 = vpow.pop %v260
    %v262 = vmul.f32 %v236, 1.442695
    %v263 = vpow.pop %v262
    %v264 = vmul.f32 %v237, 1.442695
    %v265 = vpow.pop %v264
    %v266 = vmul.f32 %v238, 1.442695
    %v267 = vpow.pop %v266
    %v268 = vmul.f32 %v239, 1.442695
    %v269 = vpow.pop %v268
    %v270 = vmul.f32 %v240, 1.442695
    %v271 = vpow.pop %v270
    %v272 = vmul.f32 %v241, 1.442695
    %v273 = vpow.pop %v272
    %v274 = vmul.f32 %v26, 0.5
    %v275 = vmul.f32 %v27, 0.5
    %v276 = vmul.f32 %v28, 0.5
    %v277 = vmul.f32 %v29, 0.5
    %v278 = vmul.f32 %v30, 0.5
    %v279 = vmul.f32 %v31, 0.5
    %v280 = vmul.f32 %v32, 0.5
    %v281 = vmul.f32 %v33, 0.5
    %v282 = vmul.f32 %v34, 0.5
    %v283 = vmul.f32 %v35, 0.5
    %v284 = vmul.f32 %v36, 0.5
    %v285 = vmul.f32 %v37, 0.5
    %v286 = vmul.f32 %v38, 0.5
    %v287 = vmul.f32 %v39, 0.5
    %v288 = vmul.f32 %v40, 0.5
    %v289 = vmul.f32 %v41, 0.5
    %v290 = vtanh.pop %v274
    %v291 = vtanh.pop %v275
    %v292 = vtanh.pop %v276
    %v293 = vtanh.pop %v277
    %v294 = vtanh.pop %v278
    %v295 = vtanh.pop %v279
    %v296 = vtanh.pop %v280
    %v297 = vtanh.pop %v281
    %v298 = vtanh.pop %v282
    %v299 = vtanh.pop %v283
    %v300 = vtanh.pop %v284
    %v301 = vtanh.pop %v285
    %v302 = vtanh.pop %v286
    %v303 = vtanh.pop %v287
    %v304 = vtanh.pop %v288
    %v305 = vtanh.pop %v289
    %v306 = vmul.f32 %v290, 0.5
    %v307 = vmul.f32 %v291, 0.5
    %v308 = vmul.f32 %v292, 0.5
    %v309 = vmul.f32 %v293, 0.5
    %v310 = vmul.f32 %v294, 0.5
    %v311 = vmul.f32 %v295, 0.5
    %v312 = vmul.f32 %v296, 0.5
    %v313 = vmul.f32 %v297, 0.5
    %v314 = vmul.f32 %v298, 0.5
    %v315 = vmul.f32 %v299, 0.5
    %v316 = vmul.f32 %v300, 0.5
    %v317 = vmul.f32 %v301, 0.5
    %v318 = vmul.f32 %v302, 0.5
    %v319 = vmul.f32 %v303, 0.5
    %v320 = vmul.f32 %v304, 0.5
    %v321 = vmul.f32 %v305, 0.5
    %v322 = vadd.f32 %v306, 0.5
    %v323 = vadd.f32 %v307, 0.5
    %v324 = vadd.f32 %v308, 0.5
    %v325 = vadd.f32 %v309, 0.5
    %v326 = vadd.f32 %v310, 0.5
    %v327 = vadd.f32 %v311, 0.5
    %v328 = vadd.f32 %v312, 0.5
    %v329 = vadd.f32 %v313, 0.5
    %v330 = vadd.f32 %v314, 0.5
    %v331 = vadd.f32 %v315, 0.5
    %v332 = vadd.f32 %v316, 0.5
    %v333 = vadd.f32 %v317, 0.5
    %v334 = vadd.f32 %v318, 0.5
    %v335 = vadd.f32 %v319, 0.5
    %v336 = vadd.f32 %v320, 0.5
    %v337 = vadd.f32 %v321, 0.5
    %339 = vset.pattern.permute.xlu0 0
    %340 = vperm.xlu0 %339, %v243
    %v341 = vpop.permute.xlu0 %340
    %344 = vset.pattern.permute.xlu0 0
    %345 = vperm.xlu0 %344, %v245
    %v346 = vpop.permute.xlu0 %345
    %349 = vset.pattern.permute.xlu0 0
    %350 = vperm.xlu0 %349, %v247
    %v351 = vpop.permute.xlu0 %350
    %354 = vset.pattern.permute.xlu0 0
    %355 = vperm.xlu0 %354, %v249
    %v356 = vpop.permute.xlu0 %355
    %359 = vset.pattern.permute.xlu0 0
    %360 = vperm.xlu0 %359, %v251
    %v361 = vpop.permute.xlu0 %360
    %364 = vset.pattern.permute.xlu0 0
    %365 = vperm.xlu0 %364, %v253
    %v366 = vpop.permute.xlu0 %365
    %369 = vset.pattern.permute.xlu0 0
    %370 = vperm.xlu0 %369, %v255
    %v371 = vpop.permute.xlu0 %370
    %374 = vset.pattern.permute.xlu0 0
    %375 = vperm.xlu0 %374, %v257
    %v376 = vpop.permute.xlu0 %375
    %379 = vset.pattern.permute.xlu0 0
    %380 = vperm.xlu0 %379, %v259
    %v381 = vpop.permute.xlu0 %380
    %384 = vset.pattern.permute.xlu0 0
    %385 = vperm.xlu0 %384, %v261
    %v386 = vpop.permute.xlu0 %385
    %389 = vset.pattern.permute.xlu0 0
    %390 = vperm.xlu0 %389, %v263
    %v391 = vpop.permute.xlu0 %390
    %394 = vset.pattern.permute.xlu0 0
    %395 = vperm.xlu0 %394, %v265
    %v396 = vpop.permute.xlu0 %395
    %399 = vset.pattern.permute.xlu0 0
    %400 = vperm.xlu0 %399, %v267
    %v401 = vpop.permute.xlu0 %400
    %404 = vset.pattern.permute.xlu0 0
    %405 = vperm.xlu0 %404, %v269
    %v406 = vpop.permute.xlu0 %405
    %409 = vset.pattern.permute.xlu0 0
    %410 = vperm.xlu0 %409, %v271
    %v411 = vpop.permute.xlu0 %410
    %414 = vset.pattern.permute.xlu0 0
    %415 = vperm.xlu0 %414, %v273
    %v416 = vpop.permute.xlu0 %415
    %v418 = vlaneseq
    %v419 = vshrl.u32 %v418, 7
    %v420 = vsub.s32 0, %v419
    %v421 = vrot.slane %v131, %v420
    %v422 = vlaneseq
    %v423 = vshrl.u32 %v422, 7
    %v424 = vsub.s32 0, %v423
    %v425 = vrot.slane %v133, %v424
    %v426 = vlaneseq
    %v427 = vshrl.u32 %v426, 7
    %v428 = vsub.s32 0, %v427
    %v429 = vrot.slane %v135, %v428
    %v430 = vlaneseq
    %v431 = vshrl.u32 %v430, 7
    %v432 = vsub.s32 0, %v431
    %v433 = vrot.slane %v137, %v432
    %v434 = vlaneseq
    %v435 = vshrl.u32 %v434, 7
    %v436 = vsub.s32 0, %v435
    %v437 = vrot.slane %v139, %v436
    %v438 = vlaneseq
    %v439 = vshrl.u32 %v438, 7
    %v440 = vsub.s32 0, %v439
    %v441 = vrot.slane %v141, %v440
    %v442 = vlaneseq
    %v443 = vshrl.u32 %v442, 7
    %v444 = vsub.s32 0, %v443
    %v445 = vrot.slane %v143, %v444
    %v446 = vlaneseq
    %v447 = vshrl.u32 %v446, 7
    %v448 = vsub.s32 0, %v447
    %v449 = vrot.slane %v145, %v448
    %v450 = vmul.f32 %v341, %v421
    %v451 = vmul.f32 %v346, %v421
    %v452 = vmul.f32 %v351, %v425
    %v453 = vmul.f32 %v356, %v425
    %v454 = vmul.f32 %v361, %v429
    %v455 = vmul.f32 %v366, %v429
    %v456 = vmul.f32 %v371, %v433
    %v457 = vmul.f32 %v376, %v433
    %v458 = vmul.f32 %v381, %v437
    %v459 = vmul.f32 %v386, %v437
    %v460 = vmul.f32 %v391, %v441
    %v461 = vmul.f32 %v396, %v441
    %v462 = vmul.f32 %v401, %v445
    %v463 = vmul.f32 %v406, %v445
    %v464 = vmul.f32 %v411, %v449
    %v465 = vmul.f32 %v416, %v449
    %v466 = vsub.f32 %v322, %v450
    %v467 = vsub.f32 %v323, %v451
    %v468 = vsub.f32 %v324, %v452
    %v469 = vsub.f32 %v325, %v453
    %v470 = vsub.f32 %v326, %v454
    %v471 = vsub.f32 %v327, %v455
    %v472 = vsub.f32 %v328, %v456
    %v473 = vsub.f32 %v329, %v457
    %v474 = vsub.f32 %v330, %v458
    %v475 = vsub.f32 %v331, %v459
    %v476 = vsub.f32 %v332, %v460
    %v477 = vsub.f32 %v333, %v461
    %v478 = vsub.f32 %v334, %v462
    %v479 = vsub.f32 %v335, %v463
    %v480 = vsub.f32 %v336, %v464
    %v481 = vsub.f32 %v337, %v465
    %v482 = vmul.f32 %v466, %v466
    %v483 = vmul.f32 %v467, %v467
    %v484 = vmul.f32 %v468, %v468
    %v485 = vmul.f32 %v469, %v469
    %v486 = vmul.f32 %v470, %v470
    %v487 = vmul.f32 %v471, %v471
    %v488 = vmul.f32 %v472, %v472
    %v489 = vmul.f32 %v473, %v473
    %v490 = vmul.f32 %v474, %v474
    %v491 = vmul.f32 %v475, %v475
    %v492 = vmul.f32 %v476, %v476
    %v493 = vmul.f32 %v477, %v477
    %v494 = vmul.f32 %v478, %v478
    %v495 = vmul.f32 %v479, %v479
    %v496 = vmul.f32 %v480, %v480
    %v497 = vmul.f32 %v481, %v481
    %v498 = vadd.f32 %v482, %v484
    %v499 = vadd.f32 %v498, %v486
    %v500 = vadd.f32 %v499, %v488
    %v501 = vadd.f32 %v500, %v490
    %v502 = vadd.f32 %v501, %v492
    %v503 = vadd.f32 %v502, %v494
    %v504 = vadd.f32 %v503, %v496
    %v505 = vadd.f32 %v483, %v485
    %v506 = vadd.f32 %v505, %v487
    %v507 = vadd.f32 %v506, %v489
    %v508 = vadd.f32 %v507, %v491
    %v509 = vadd.f32 %v508, %v493
    %v510 = vadd.f32 %v509, %v495
    %v511 = vadd.f32 %v510, %v497
    %512 = vadd.xlane.f32.xlu0 %v504
    %v513 = vpop.xlane.xlu0 %512
    %514 = vadd.xlane.f32.xlu0 %v511
    %v515 = vpop.xlane.xlu0 %514
    %v516 = vadd.f32 %v513, %v515
    %v517 = vrot.slane %v516, 4
    %v518 = vadd.f32 %v516, %v517
    %v519 = vrot.slane %v518, 2
    %v520 = vadd.f32 %v518, %v519
    %v521 = vrot.slane %v520, 1
    %v522 = vadd.f32 %v520, %v521
    %vm523 = vcmask 0
    %524 = vst.msk [vmem:[#allocation5] sm:$0x1] %vm523, %v522
    // Predicated region
    $region14: #{wrap_mse_loss_from_params.1} parent=1 // pred_check
      _
    $region15: #{wrap_mse_loss_from_params.1} parent=1 // pred_check_branch
      %526 = sbr.rel (0) target = $region17
    $region16: #{wrap_mse_loss_from_params.1} parent=1 // pred_region
      %s528 = ssub.s32 16, 16
      %529 = vsyncadd [#allocation4], %s528
      %s531 = sshll.u32 [#allocation5], 4
      %s532 = int_to_ptr.vmem [resolvable:$true] %s531
      %534 = dma.vmem_to_hbm [thread:$0]  %s532, 16, %s2, [#allocation4]
    $region17: #{wrap_mse_loss_from_params.1} parent=1 // pred_fallthru
      _
    // Predicated region
    $region18: #{wrap_mse_loss_from_params.1} parent=1 // pred_check
      _
    $region19: #{wrap_mse_loss_from_params.1} parent=1 // pred_check_branch
      %536 = sbr.rel (0) target = $region21
    $region20: #{wrap_mse_loss_from_params.1} parent=1 // pred_region
      %537 = dma.done [#allocation4], 16
    $region21: #{wrap_mse_loss_from_params.1} parent=1 // pred_fallthru
      _
    %538 = vsyncpa [#allocation3], 1
    %539 = vsyncpa [#allocation4], 1

</llo_original>
